<compile_context>
chip_gen: v7x
topology: tpu7x:2x2x1
jax: 0.10.0
libtpu: 0.0.40
codegen_flags: <defaults>
</compile_context>

<pallas_src>
import jax
import jax.numpy as jnp
from jax.experimental import pallas as pl
from jax.experimental.pallas import tpu as pltpu

IN_FEATURES = 10
OUT_FEATURES = 1

# Largest-first candidates; capped at 8192 so (x + out) double-buffered VMEM
# stays ~16 MiB (safe on v5e/v6e/v7x with the explicit vmem limit below).
_TILE_CANDIDATES = (8192, 4096, 2048, 1024, 512, 256, 128)


def _linear_kernel(x_ref, w_ref, b_ref, o_ref):
    # x_ref: (TILE_B, IN)  VMEM  -- x rows, features on the lane axis
    # w_ref: (1, IN)       VMEM  -- fc1 weight row
    # b_ref: (1, 1)        SMEM  -- fc1 bias scalar
    # o_ref: (TILE_B, 1)   VMEM  -- y rows
    prod = x_ref[...] * w_ref[...]                    # VPU broadcast multiply
    acc = jnp.sum(prod, axis=1, keepdims=True)        # XLU lane reduce -> (TILE_B, 1)
    o_ref[...] = (acc + b_ref[0, 0]).astype(o_ref.dtype)


def _pick_tile_b(batch):
    # Small batches: one full block (block_shape == full dim is always legal,
    # even when not 8-aligned).
    if batch <= 256:
        return batch
    # Largest tile that still yields >= 2 grid steps, so the pipeline has
    # something to overlap and v7x can shard the batch across its 2 TCs.
    for t in _TILE_CANDIDATES:
        if 2 * t <= batch:
            return t
    return 128


def pallas_linear(x, w, b):
    """PyTorch Linear(10, 1) forward: y = x @ w.T + b.

    x: (B, 10) float32, w: (1, 10) float32, b: (1,) float32 -> y: (B, 1).
    """
    batch = x.shape[0]
    tile_b = _pick_tile_b(batch)
    grid = (pl.cdiv(batch, tile_b),)                  # ragged last block is masked

    b_smem = b.reshape(1, 1).astype(jnp.float32)      # scalar bias in SMEM

    y = pl.pallas_call(
        _linear_kernel,
        out_shape=jax.ShapeDtypeStruct((batch, OUT_FEATURES), x.dtype),
        grid=grid,
        in_specs=[
            pl.BlockSpec((tile_b, IN_FEATURES), lambda i: (i, 0)),
            pl.BlockSpec((OUT_FEATURES, IN_FEATURES), lambda i: (0, 0)),
            pl.BlockSpec(memory_space=pltpu.MemorySpace.SMEM),
        ],
        out_specs=pl.BlockSpec((tile_b, OUT_FEATURES), lambda i: (i, 0)),
        compiler_params=pltpu.CompilerParams(
            dimension_semantics=("parallel",),
            vmem_limit_bytes=32 * 1024 * 1024,
        ),
    )(x, w, b_smem)

    return y                                          # (B, 1), matches torch Linear


if __name__ == "__main__":
    key = jax.random.PRNGKey(0)
    kx, kw, kb, kx2 = jax.random.split(key, 4)

    # Deterministic "parameters" mimicking torch.nn.Linear(10, 1) init
    # (uniform in [-1/sqrt(in_features), 1/sqrt(in_features)]).
    bound = 1.0 / (IN_FEATURES ** 0.5)
    w = jax.random.uniform(kw, (OUT_FEATURES, IN_FEATURES),
                           minval=-bound, maxval=bound, dtype=jnp.float32)
    b = jax.random.uniform(kb, (OUT_FEATURES,),
                           minval=-bound, maxval=bound, dtype=jnp.float32)

    # Primary example: batch=8, features=10 (same layout as the torch module).
    x = jax.random.normal(kx, (8, IN_FEATURES), dtype=jnp.float32)
    y = pallas_linear(x, w, b)
    jax.block_until_ready(y)
    y_ref = x @ w.T + b
    assert y.shape == (8, OUT_FEATURES)
    assert jnp.allclose(y, y_ref, atol=1e-5, rtol=1e-5), "mismatch vs reference"

    # Secondary check: 128-unaligned batch exercises the cdiv / ragged-tail path.
    x2 = jax.random.normal(kx2, (300, IN_FEATURES), dtype=jnp.float32)
    y2 = pallas_linear(x2, w, b)
    jax.block_until_ready(y2)
    y2_ref = x2 @ w.T + b
    assert y2.shape == (300, OUT_FEATURES)
    assert jnp.allclose(y2, y2_ref, atol=1e-5, rtol=1e-5), "mismatch vs reference (ragged)"

    print("KERNEL_OK")
</pallas_src>

<mosaic_0001>
module attributes {stable_mosaic.version = 11 : i64} {
  func.func @_linear_kernel(%arg0: i32, %arg1: memref<8x10xf32, #tpu.memory_space<vmem>>, %arg2: memref<1x10xf32, #tpu.memory_space<vmem>>, %arg3: memref<1x1xf32, #tpu.memory_space<smem>>, %arg4: memref<8x1xf32, #tpu.memory_space<vmem>>) attributes {dimension_semantics = [#tpu.dimension_semantics<parallel>], iteration_bounds = array<i64: 1>, scalar_prefetch = 0 : i64, scratch_operands = 0 : i64, tpu.core_type = #tpu.core_type<tc>, window_params = [{transform_indices = @transform_0, window_bounds = array<i64: 8, 10>}, {pipeline_mode = #tpu.pipeline_mode<synchronous>, transform_indices = @transform_1, window_bounds = array<i64: 1, 10>}, {transform_indices = @transform_2, window_bounds = array<i64: 1, 1>}, {transform_indices = @transform_3, window_bounds = array<i64: 8, 1>}]} {
    %c0 = arith.constant 0 : index
    %c0_0 = arith.constant 0 : index
    %0 = vector.load %arg1[%c0, %c0_0] : memref<8x10xf32, #tpu.memory_space<vmem>>, vector<8x10xf32>
    %c0_1 = arith.constant 0 : index
    %c0_2 = arith.constant 0 : index
    %1 = vector.load %arg2[%c0_1, %c0_2] : memref<1x10xf32, #tpu.memory_space<vmem>>, vector<1x10xf32>
    %2 = vector.broadcast %1 : vector<1x10xf32> to vector<8x10xf32>
    %3 = arith.mulf %0, %2 : vector<8x10xf32>
    %cst = arith.constant dense<0.000000e+00> : vector<8xf32>
    %4 = vector.multi_reduction <add>, %3, %cst [1] : vector<8x10xf32> to vector<8xf32>
    %5 = vector.shape_cast %4 : vector<8xf32> to vector<8x1xf32>
    %c0_3 = arith.constant 0 : index
    %c0_4 = arith.constant 0 : index
    %6 = memref.load %arg3[%c0_3, %c0_4] : memref<1x1xf32, #tpu.memory_space<smem>>
    %7 = vector.broadcast %6 : f32 to vector<8x1xf32>
    %8 = arith.addf %5, %7 : vector<8x1xf32>
    %c0_5 = arith.constant 0 : index
    %c0_6 = arith.constant 0 : index
    %9 = vector.load %arg4[%c0_5, %c0_6] : memref<8x1xf32, #tpu.memory_space<vmem>>, vector<8x1xf32>
    tpu.vector_store %arg4[%c0_5, %c0_6], %8 {strides = array<i32>} : memref<8x1xf32, #tpu.memory_space<vmem>>, vector<8x1xf32>,
    return
  }
  func.func @transform_0(%arg0: i32) -> (i32, i32) {
    %c0_i32 = arith.constant 0 : i32
    %c0_i32_0 = arith.constant 0 : i32
    return %arg0, %c0_i32 : i32, i32
  }
  func.func @transform_1(%arg0: i32) -> (i32, i32) {
    %c0_i32 = arith.constant 0 : i32
    %c0_i32_0 = arith.constant 0 : i32
    %c0_i32_1 = arith.constant 0 : i32
    return %c0_i32, %c0_i32_0 : i32, i32
  }
  func.func @transform_2(%arg0: i32) -> (i32, i32) {
    %c0_i32 = arith.constant 0 : i32
    %c0_i32_0 = arith.constant 0 : i32
    %c0_i32_1 = arith.constant 0 : i32
    return %c0_i32, %c0_i32_0 : i32, i32
  }
  func.func @transform_3(%arg0: i32) -> (i32, i32) {
    %c0_i32 = arith.constant 0 : i32
    %c0_i32_0 = arith.constant 0 : i32
    return %arg0, %c0_i32 : i32, i32
  }
}

</mosaic_0001>

<llo_original>
// kernel: tpu_custom_call.1
$region0: #{tpu_custom_call.1}
  #allocation0 [shape = 'u32[]', space=smem, size = 0x4, offset = 0x4, fixed_abs, tag = 'smem constant byte address 0x4 - core index']
  #allocation1 [shape = 'u32[144,128]{1,0:T(1,128)}', space=vmem, size = 0x12000, scoped, tag = 'internal scratch']
  #allocation2 [shape = 'f32[1,1]{1,0:T(1,128)S(6)}', space=smem, size = 0x200, scoped, tag = 'scoped memory for tpu_custom_call.1']
  %s0 = inlined_call_operand.hbm [shape: f32[8,10], index: 0, kind: input, shape index: {}]
  %s1 = inlined_call_operand.vmem [shape: f32[1,10], index: 1, kind: input, shape index: {}]
  %s2 = inlined_call_operand.<no memory space> [shape: f32[1,1], index: 2, kind: input, shape index: {}]
  %s3 = inlined_call_operand.vmem [shape: f32[8,1], index: 3, kind: output, shape index: {}]
  %s4 = sld [smem:[#allocation0]]
  $region26: #{tpu_custom_call.1} parent=0
    _
  %s6 = ssub.s32 1, %s4
  %s7 = scalar_select 0, %s6, %s4
  %8 = sst [smem:[#allocation2]] %s2
  $region1: #{tpu_custom_call.1} parent=0
    #allocation3 [shape = 'u8[4096]{0}', space=vmem, size = 0x1000, scoped, tag = 'input window, operand 0, single buffered']
    #allocation4 [shape = 's32[1]{0}', space=sflag, size = 0x4, scoped, tag = 'scoped memory for tpu_custom_call.1']
    %9 = vsyncpa [#allocation4], 0
    // Predicated region
    $region2: #{tpu_custom_call.1} parent=1 // pred_check
      _
    $region3: #{tpu_custom_call.1} parent=1 // pred_check_branch
      %11 = sbr.rel (0) target = $region5
    $region4: #{tpu_custom_call.1} parent=1 // pred_region
      %s13 = ssub.s32 128, 128
      %14 = vsyncadd [#allocation4], %s13
      %s16 = sshll.u32 [#allocation3], 4
      %s17 = int_to_ptr.vmem [resolvable:$true] %s16
      %19 = dma.hbm_to_vmem [thread:$0]  %s0, 128, %s17, [#allocation4]
    $region5: #{tpu_custom_call.1} parent=1 // pred_fallthru
      _
    // Predicated region
    $region6: #{tpu_custom_call.1} parent=1 // pred_check
      _
    $region7: #{tpu_custom_call.1} parent=1 // pred_check_branch
      %21 = sbr.rel (0) target = $region9
    $region8: #{tpu_custom_call.1} parent=1 // pred_region
      _
    $region9: #{tpu_custom_call.1} parent=1 // pred_fallthru
      _
    // Predicated region
    $region10: #{tpu_custom_call.1} parent=1 // pred_check
      _
    $region11: #{tpu_custom_call.1} parent=1 // pred_check_branch
      %23 = sbr.rel (0) target = $region13
    $region12: #{tpu_custom_call.1} parent=1 // pred_region
      _
    $region13: #{tpu_custom_call.1} parent=1 // pred_fallthru
      _
    // Predicated region
    $region14: #{tpu_custom_call.1} parent=1 // pred_check
      _
    $region15: #{tpu_custom_call.1} parent=1 // pred_check_branch
      %25 = sbr.rel (0) target = $region17
    $region16: #{tpu_custom_call.1} parent=1 // pred_region
      %26 = dma.done [#allocation4], 128
    $region17: #{tpu_custom_call.1} parent=1 // pred_fallthru
      _
    %v27 = vld [vmem:[#allocation3] sm:$0xff]
    %v28 = vld [vmem:[%s1] sm:$0x1]
    %v30 = vlaneseq
    %v31 = vshrl.u32 %v30, 7
    %v32 = vsub.s32 0, %v31
    %v33 = vrot.slane %v28, %v32
    %v35 = vmul.f32 %v27, %v33
    %vm36 = vcmask 80896
    %v37 = vsel %vm36, %v35, 0.0
    %38 = vadd.xlane.f32.xlu0 %v37
    %v39 = vpop.xlane.xlu0 %38
    %s40 = sld [smem:[#allocation2]]
    %v41 = vstv %s40
    %v42 = vadd.f32 %v39, %v41
    %vm43 = vcmask 7168
    %44 = vst.msk [vmem:[%s3] sm:$0xff] %vm43, %v42
    // Predicated region
    $region18: #{tpu_custom_call.1} parent=1 // pred_check
      _
    $region19: #{tpu_custom_call.1} parent=1 // pred_check_branch
      %46 = sbr.rel (0) target = $region21
    $region20: #{tpu_custom_call.1} parent=1 // pred_region
      _
    $region21: #{tpu_custom_call.1} parent=1 // pred_fallthru
      _
    // Predicated region
    $region22: #{tpu_custom_call.1} parent=1 // pred_check
      _
    $region23: #{tpu_custom_call.1} parent=1 // pred_check_branch
      %48 = sbr.rel (0) target = $region25
    $region24: #{tpu_custom_call.1} parent=1 // pred_region
      _
    $region25: #{tpu_custom_call.1} parent=1 // pred_fallthru
      _
    %49 = vsyncpa [#allocation4], 1

</llo_original>
